<compile_context>
chip_gen: v7x
topology: tpu7x:2x2x1
jax: 0.10.0
libtpu: 0.0.40
codegen_flags: <defaults>
</compile_context>

<pallas_src>
import functools

import jax
import jax.numpy as jnp
from jax.experimental import pallas as pl
from jax.experimental.pallas import tpu as pltpu


def _round_up(x, m):
    return ((x + m - 1) // m) * m


# --------------------------------------------------------------------------- #
# VMEM budgeting (generation aware)
# --------------------------------------------------------------------------- #
def _vmem_budget_bytes():
    """Usable VMEM budget for this kernel (tile sizing AND vmem_limit_bytes)."""
    cap = 128 * 1024 * 1024
    try:
        cap = int(pltpu.get_tpu_info().vmem_capacity_bytes)
    except Exception:
        pass
    if cap <= 64 * 1024 * 1024:
        # v7x: 64 MiB per TensorCore -> leave headroom for Mosaic scratch.
        return 48 * 1024 * 1024
    # v5e / v6e: 128 MiB physical; use ~75%, capped for safety.
    return min(int(0.75 * cap), 96 * 1024 * 1024)


def _choose_tile_n(dim_input, dp, w_itemsize, budget):
    """Largest 128-multiple column tile dividing dp whose double-buffered
    fused weight slab uses at most ~40% of the VMEM budget."""
    cap = int(0.4 * budget)
    best = 128
    for t in range(128, dp + 1, 128):
        if dp % t == 0 and 2 * dim_input * 2 * t * w_itemsize <= cap:
            best = t
    return best


def _choose_tile_m(batch, dim_input, tn, x_itemsize, w_itemsize, out_itemsize, budget):
    """Largest 8-aligned batch tile whose full footprint fits the budget.

    Counts: double-buffered x and out blocks, double-buffered weight + bias
    slab, and (per review) the (tile_m, 2*tn) f32 intermediate h plus ~2x slack
    for the sigmoid / product temporaries.
    """
    fixed = 2 * dim_input * 2 * tn * w_itemsize + 2 * 2 * tn * 4  # weights + f32 bias
    per_row = (2 * dim_input * x_itemsize          # x block, double-buffered
               + 2 * tn * out_itemsize             # out block, double-buffered
               + 3 * 2 * tn * 4)                   # f32 h + gate temporaries
    avail = max(budget - fixed, 0)
    tile = avail // max(per_row, 1)
    tile = min(int(tile), 1024, _round_up(batch, 8))
    tile = max(8, (tile // 8) * 8)
    return tile


# --------------------------------------------------------------------------- #
# Parameter packing (done ONCE, outside the per-call path)
# --------------------------------------------------------------------------- #
def make_glu_plan(dim_input, d_model, *, matmul_dtype=jnp.bfloat16, x_dtype=jnp.float32):
    """Pick the column tile and VMEM budget for this (dim_input, d_model) GLU."""
    budget = _vmem_budget_bytes()
    dp = _round_up(d_model, 128)
    wdt = matmul_dtype if matmul_dtype is not None else x_dtype
    w_itemsize = jnp.dtype(wdt).itemsize
    tn = _choose_tile_n(dim_input, dp, w_itemsize, budget)
    return {"dp": dp, "tile_n": tn, "budget": budget, "matmul_dtype": matmul_dtype}


def pack_glu_params(w1, b1, w2, b2, *, tile_n, matmul_dtype=jnp.bfloat16):
    """Pad d_model to a multiple of 128 and interleave per-N-tile [W1_j | W2_j].

    Returns wf: (dim_input, 2*dp) in matmul_dtype (or original dtype if None)
            bf: (1, 2*dp) in f32 (bias added to the f32 accumulator).
    Call once at parameter-creation time; avoids re-padding / re-casting the
    full weight in HBM on every forward call.
    """
    dim_input, d_model = w1.shape
    dp = _round_up(d_model, 128)
    pad = dp - d_model
    if pad:
        w1 = jnp.pad(w1, ((0, 0), (0, pad)))
        w2 = jnp.pad(w2, ((0, 0), (0, pad)))
        b1 = jnp.pad(b1, ((0, pad),))
        b2 = jnp.pad(b2, ((0, pad),))
    assert dp % tile_n == 0
    nj = dp // tile_n
    wf = jnp.concatenate(
        [w1.reshape(dim_input, nj, tile_n), w2.reshape(dim_input, nj, tile_n)], axis=2
    ).reshape(dim_input, 2 * dp)
    bf = jnp.concatenate(
        [b1.reshape(nj, tile_n), b2.reshape(nj, tile_n)], axis=1
    ).reshape(1, 2 * dp)
    if matmul_dtype is not None:
        wf = wf.astype(matmul_dtype)
    bf = bf.astype(jnp.float32)
    return wf, bf


# --------------------------------------------------------------------------- #
# Kernel
# --------------------------------------------------------------------------- #
def _glu_kernel(x_ref, wf_ref, bf_ref, o_ref, *, tn):
    """One (column-tile, batch-tile) step:
    h = x @ [W1_j | W2_j] + [b1_j | b2_j];  out_j = sigmoid(h1) * h2."""
    x = x_ref[...]
    if x.dtype != wf_ref.dtype:
        x = x.astype(wf_ref.dtype)        # only the per-tile activation is cast
    h = jnp.dot(x, wf_ref[...], preferred_element_type=jnp.float32) + bf_ref[...]
    h1 = h[:, :tn]                        # fc1(x) columns (128-aligned split)
    h2 = h[:, tn:]                        # fc2(x) columns
    # gate math stays in f32 (EUP sigmoid is effectively free; no bf16 VPU on v5e)
    o_ref[...] = (jax.nn.sigmoid(h1) * h2).astype(o_ref.dtype)


def glu_forward_packed(x, wf, bf, *, d_model, tile_n, budget=None):
    """Forward with pre-packed fused weights.  x: (..., dim_input)."""
    orig_shape = x.shape
    dim_input = orig_shape[-1]
    dp = wf.shape[1] // 2
    assert dp % tile_n == 0
    nj = dp // tile_n

    x2d = x.reshape(-1, dim_input)
    batch = x2d.shape[0]
    if budget is None:
        budget = _vmem_budget_bytes()

    x_itemsize = jnp.dtype(x.dtype).itemsize
    w_itemsize = jnp.dtype(wf.dtype).itemsize
    tile_m = _choose_tile_m(batch, dim_input, tile_n, x_itemsize, w_itemsize,
                            x_itemsize, budget)

    batch_p = _round_up(batch, tile_m)
    ni = batch_p // tile_m
    # v7x megacore: make sure there are >=2 grid steps to shard across the 2 TCs.
    if ni * nj < 2 and batch > 8:
        tile_m = max(8, _round_up(-(-batch // 2), 8))
        batch_p = 2 * tile_m
        ni = 2
    if batch_p != batch:
        x2d = jnp.pad(x2d, ((0, batch_p - batch), (0, 0)))

    kernel = functools.partial(_glu_kernel, tn=tile_n)

    out = pl.pallas_call(
        kernel,
        out_shape=jax.ShapeDtypeStruct((batch_p, dp), x.dtype),
        grid_spec=pltpu.PrefetchScalarGridSpec(
            num_scalar_prefetch=0,
            # column tiles OUTER -> each weight slab is DMA'd exactly once;
            # batch tiles INNER stream the activations.
            grid=(nj, ni),
            in_specs=[
                pl.BlockSpec((tile_m, dim_input), lambda j, i: (i, 0)),
                pl.BlockSpec((dim_input, 2 * tile_n), lambda j, i: (0, j)),
                pl.BlockSpec((1, 2 * tile_n), lambda j, i: (0, j)),
            ],
            out_specs=pl.BlockSpec((tile_m, tile_n), lambda j, i: (i, j)),
        ),
        compiler_params=pltpu.CompilerParams(
            # all tiles independent -> both axes shardable across TensorCores.
            dimension_semantics=("parallel", "parallel"),
            vmem_limit_bytes=int(budget),
        ),
    )(x2d, wf, bf)

    # strip batch / lane padding and restore leading dims.
    out = out[:batch, :d_model]
    return out.reshape(*orig_shape[:-1], d_model)


def glu_pallas(x, w1, b1, w2, b2, *, matmul_dtype=jnp.bfloat16):
    """Convenience wrapper (packs per call).  For production, pack once with
    pack_glu_params and call glu_forward_packed directly."""
    dim_input, d_model = w1.shape
    plan = make_glu_plan(dim_input, d_model, matmul_dtype=matmul_dtype,
                         x_dtype=x.dtype)
    wf, bf = pack_glu_params(w1, b1, w2, b2, tile_n=plan["tile_n"],
                             matmul_dtype=matmul_dtype)
    return glu_forward_packed(x, wf, bf, d_model=d_model, tile_n=plan["tile_n"],
                              budget=plan["budget"])


def init_glu_params(key, dim_input, d_model, dtype=jnp.float32):
    """Deterministic init mimicking nn.Linear's U(-1/sqrt(fan_in), 1/sqrt(fan_in))."""
    k1, k2, k3, k4 = jax.random.split(key, 4)
    bound = 1.0 / jnp.sqrt(jnp.asarray(dim_input, dtype))
    # stored already transposed: (dim_input, d_model)
    w1 = jax.random.uniform(k1, (dim_input, d_model), dtype, -bound, bound)
    b1 = jax.random.uniform(k2, (d_model,), dtype, -bound, bound)
    w2 = jax.random.uniform(k3, (dim_input, d_model), dtype, -bound, bound)
    b2 = jax.random.uniform(k4, (d_model,), dtype, -bound, bound)
    return w1, b1, w2, b2


if __name__ == "__main__":
    key = jax.random.PRNGKey(0)
    kx, kp = jax.random.split(key)

    batch, seq, dim_input, d_model = 2, 8, 16, 32
    x = jax.random.normal(kx, (batch, seq, dim_input), jnp.float32)
    w1, b1, w2, b2 = init_glu_params(kp, dim_input, d_model)

    # plain-JAX reference
    ref = jax.nn.sigmoid(x @ w1 + b1) * (x @ w2 + b2)

    # --- f32 matmul path (tight numerical check), hoisted weight packing -----
    plan = make_glu_plan(dim_input, d_model, matmul_dtype=None, x_dtype=x.dtype)
    wf, bf = pack_glu_params(w1, b1, w2, b2, tile_n=plan["tile_n"], matmul_dtype=None)
    out_f32 = glu_forward_packed(x, wf, bf, d_model=d_model,
                                 tile_n=plan["tile_n"], budget=plan["budget"])
    out_f32 = jax.block_until_ready(out_f32)
    assert out_f32.shape == (batch, seq, d_model)
    assert jnp.allclose(out_f32, ref, atol=1e-5, rtol=1e-5)

    # --- default bf16 matmul path (f32 accumulate / gate math), looser check -
    out_bf16 = jax.block_until_ready(glu_pallas(x, w1, b1, w2, b2))
    assert out_bf16.shape == (batch, seq, d_model)
    assert jnp.allclose(out_bf16, ref, atol=5e-2, rtol=5e-2)

    print("KERNEL_OK")
</pallas_src>

<mosaic_0001>
module attributes {stable_mosaic.version = 11 : i64} {
  func.func @_glu_kernel(%arg0: i32, %arg1: i32, %arg2: memref<8x16xf32, #tpu.memory_space<vmem>>, %arg3: memref<16x256xf32, #tpu.memory_space<vmem>>, %arg4: memref<1x256xf32, #tpu.memory_space<vmem>>, %arg5: memref<8x128xf32, #tpu.memory_space<vmem>>) attributes {dimension_semantics = [#tpu.dimension_semantics<parallel>, #tpu.dimension_semantics<parallel>], iteration_bounds = array<i64: 1, 2>, scalar_prefetch = 0 : i64, scratch_operands = 0 : i64, tpu.core_type = #tpu.core_type<tc>, window_params = [{transform_indices = @transform_0, window_bounds = array<i64: 8, 16>}, {transform_indices = @transform_1, window_bounds = array<i64: 16, 256>}, {transform_indices = @transform_2, window_bounds = array<i64: 1, 256>}, {transform_indices = @transform_3, window_bounds = array<i64: 8, 128>}]} {
    %c0 = arith.constant 0 : index
    %c0_0 = arith.constant 0 : index
    %0 = vector.load %arg2[%c0, %c0_0] : memref<8x16xf32, #tpu.memory_space<vmem>>, vector<8x16xf32>
    %c0_1 = arith.constant 0 : index
    %c0_2 = arith.constant 0 : index
    %1 = vector.load %arg3[%c0_1, %c0_2] : memref<16x256xf32, #tpu.memory_space<vmem>>, vector<16x256xf32>
    %cst = arith.constant dense<0.000000e+00> : vector<8x256xf32>
    %2 = tpu.matmul %0, %1, %cst {dimension_numbers = #tpu.dot_dimension_numbers<[1], [0], [0], [1], [0, 0, 1, 1], [], []>} : vector<8x16xf32>, vector<16x256xf32>, vector<8x256xf32> -> vector<8x256xf32>
    %c0_3 = arith.constant 0 : index
    %c0_4 = arith.constant 0 : index
    %3 = vector.load %arg4[%c0_3, %c0_4] : memref<1x256xf32, #tpu.memory_space<vmem>>, vector<1x256xf32>
    %4 = vector.broadcast %3 : vector<1x256xf32> to vector<8x256xf32>
    %5 = arith.addf %2, %4 : vector<8x256xf32>
    %6 = vector.extract_strided_slice %5 {offsets = [0, 0], sizes = [8, 128], strides = [1, 1]} : vector<8x256xf32> to vector<8x128xf32>
    %7 = vector.extract_strided_slice %5 {offsets = [0, 128], sizes = [8, 128], strides = [1, 1]} : vector<8x256xf32> to vector<8x128xf32>
    %8 = arith.negf %6 : vector<8x128xf32>
    %9 = math.exp %8 : vector<8x128xf32>
    %cst_5 = arith.constant 1.000000e+00 : f32
    %10 = vector.broadcast %cst_5 : f32 to vector<8x128xf32>
    %11 = arith.addf %10, %9 : vector<8x128xf32>
    %12 = arith.divf %10, %11 : vector<8x128xf32>
    %13 = arith.mulf %12, %7 : vector<8x128xf32>
    %c0_6 = arith.constant 0 : index
    %c0_7 = arith.constant 0 : index
    %14 = vector.load %arg5[%c0_6, %c0_7] : memref<8x128xf32, #tpu.memory_space<vmem>>, vector<8x128xf32>
    tpu.vector_store %arg5[%c0_6, %c0_7], %13 {strides = array<i32>} : memref<8x128xf32, #tpu.memory_space<vmem>>, vector<8x128xf32>,
    return
  }
  func.func @transform_0(%arg0: i32, %arg1: i32) -> (i32, i32) {
    %c0_i32 = arith.constant 0 : i32
    %c0_i32_0 = arith.constant 0 : i32
    return %arg1, %c0_i32 : i32, i32
  }
  func.func @transform_1(%arg0: i32, %arg1: i32) -> (i32, i32) {
    %c0_i32 = arith.constant 0 : i32
    %c0_i32_0 = arith.constant 0 : i32
    return %c0_i32, %arg0 : i32, i32
  }
  func.func @transform_2(%arg0: i32, %arg1: i32) -> (i32, i32) {
    %c0_i32 = arith.constant 0 : i32
    %c0_i32_0 = arith.constant 0 : i32
    return %c0_i32, %arg0 : i32, i32
  }
  func.func @transform_3(%arg0: i32, %arg1: i32) -> (i32, i32) {
    %c0_i32 = arith.constant 0 : i32
    return %arg1, %arg0 : i32, i32
  }
}

</mosaic_0001>

<llo_original>
// kernel: tpu_custom_call.1
$region0: #{tpu_custom_call.1}
  #allocation0 [shape = 'u32[]', space=smem, size = 0x4, offset = 0x4, fixed_abs, tag = 'smem constant byte address 0x4 - core index']
  #allocation1 [shape = 'u32[144,128]{1,0:T(1,128)}', space=vmem, size = 0x12000, scoped, tag = 'internal scratch']
  %s0 = inlined_call_operand.hbm [shape: f32[16,16], index: 0, kind: input, shape index: {}]
  %s1 = inlined_call_operand.hbm [shape: f32[16,256], index: 1, kind: input, shape index: {}]
  %s2 = inlined_call_operand.hbm [shape: f32[1,256], index: 2, kind: input, shape index: {}]
  %s3 = inlined_call_operand.hbm [shape: f32[16,128], index: 3, kind: output, shape index: {}]
  %s4 = sld [smem:[#allocation0]]
  $region57: #{tpu_custom_call.1} parent=0
    _
  %s6 = ssub.s32 1, %s4
  %s7 = scalar_select 0, %s6, %s4
  $region1: #{tpu_custom_call.1} parent=0
    #allocation2 [shape = 'u8[8192]{0}', space=vmem, size = 0x2000, scoped, tag = 'input window, operand 0']
    #allocation3 [shape = 's32[2]{0}', space=sflag, size = 0x8, scoped, tag = 'scoped memory for tpu_custom_call.1']
    #allocation4 [shape = 's32[2]{0}', space=sflag, size = 0x8, scoped, tag = 'scoped memory for tpu_custom_call.1']
    #allocation5 [shape = 'u8[16384]{0}', space=vmem, size = 0x4000, scoped, tag = 'input window, operand 1, single buffered']
    #allocation6 [shape = 's32[1]{0}', space=sflag, size = 0x4, scoped, tag = 'scoped memory for tpu_custom_call.1']
    #allocation7 [shape = 'u8[1024]{0}', space=vmem, size = 0x400, scoped, tag = 'input window, operand 2, single buffered']
    #allocation8 [shape = 'u8[8192]{0}', space=vmem, size = 0x2000, scoped, tag = 'output window, operand 0']
    %8 = vsyncpa [#allocation3], 0
    %s9 = scalar_lea.sflag [#allocation3], 1
    %10 = vsyncpa %s9, 0
    %11 = vsyncpa [#allocation6], 0
    %12 = vsyncpa [#allocation4], 0
    %s13 = scalar_lea.sflag [#allocation4], 1
    %14 = vsyncpa %s13, 0
    loop: start=0, step=1, limit=4
    $region2: #{tpu_custom_call.1} parent=1 // loop_pre_header
      _
    $region3: #{tpu_custom_call.1} parent=1 // loop_header
      %s16 = sphi 0, %s20
      %p17 = scmp.ge.s32.totalorder %s16, 4
      %s23 = sphi 0, %s35
      %s24 = sphi 0, %s31
      %s25 = sphi 0, %s23
      %s26 = sphi 0, %s24
      %s27 = sphi 0, %s25
      %s28 = sphi 0, %s26
      %s38 = sphi 0, %s40
      %s41 = sphi 0, %s38
      %s42 = sphi 0, %s41
      %s58 = sphi 0, %s42
      %s64 = sphi 0, %s66
      %s67 = sphi 0, %s64
      %s68 = sphi 0, %s67
      %s84 = sphi 0, %s68
      %s90 = sphi 0, %s92
      %s93 = sphi 0, %s90
      %s94 = sphi 0, %s93
      %s110 = sphi 0, %s94
      %s118 = sphi 0, %s120
      %s121 = sphi 0, %s118
      %s122 = sphi 0, %s121
      %s138 = sphi 0, %s122
    $region4: #{tpu_custom_call.1} parent=1 // loop_header_branch
      %19 = sbr.rel (%p17) target = $region8
    $region5: #{tpu_custom_call.1} parent=1 // loop_body
      %s21 = ssub.s32 %s16, 1
      %s22 = ssub.s32 %s16, 2
      %s29 = sadd.s32 1, %s24
      %p30 = scmp.ge.s32.totalorder %s29, 2
      %s31 = scalar_select %p30, 0, %s29
      %s32 = sadd.s32 1, %s23
      %s33 = scalar_select %p30, %s32, %s23
      %p34 = scmp.ge.s32.totalorder %s33, 1
      %s35 = scalar_select %p34, 0, %s33
      %s36 = ssub.s32 %s24, %s31
      %p37 = scmp.eq.s32.totalorder %s36, 0
      %s39 = sadd.s32 %s38, 1
      %s40 = scalar_select %p37, %s38, %s39
      %p43 = pneg %p37
      %p44 = scmp.eq.s32.totalorder %s16, 1
      %p45 = por %p43, %p44
      %p46 = scmp.ne.s32.totalorder %s38, %s41
      %p47 = scmp.eq.s32.totalorder %s16, 0
      %p48 = por %p46, %p47
      %p49 = scmp.ne.s32.totalorder %s38, %s41
      %p50 = scmp.eq.s32.totalorder %s21, 1
      %p51 = por %p49, %p50
      %p52 = scmp.ne.s32.totalorder %s41, %s42
      %p53 = scmp.eq.s32.totalorder %s21, 0
      %p54 = por %p52, %p53
      %p55 = scmp.ne.s32.totalorder %s41, %s42
      %p56 = scmp.eq.s32.totalorder %s22, 1
      %p57 = por %p55, %p56
      %p59 = scmp.ne.s32.totalorder %s42, %s58
      %p60 = scmp.eq.s32.totalorder %s22, 0
      %p61 = por %p59, %p60
      %s62 = ssub.s32 %s23, %s35
      %p63 = scmp.eq.s32.totalorder %s62, 0
      %s65 = sadd.s32 %s64, 1
      %s66 = scalar_select %p63, %s64, %s65
      %p69 = pneg %p63
      %p70 = scmp.eq.s32.totalorder %s16, 1
      %p71 = por %p69, %p70
      %p72 = scmp.ne.s32.totalorder %s64, %s67
      %p73 = scmp.eq.s32.totalorder %s16, 0
      %p74 = por %p72, %p73
      %p75 = scmp.ne.s32.totalorder %s64, %s67
      %p76 = scmp.eq.s32.totalorder %s21, 1
      %p77 = por %p75, %p76
      %p78 = scmp.ne.s32.totalorder %s67, %s68
      %p79 = scmp.eq.s32.totalorder %s21, 0
      %p80 = por %p78, %p79
      %p81 = scmp.ne.s32.totalorder %s67, %s68
      %p82 = scmp.eq.s32.totalorder %s22, 1
      %p83 = por %p81, %p82
      %p85 = scmp.ne.s32.totalorder %s68, %s84
      %p86 = scmp.eq.s32.totalorder %s22, 0
      %p87 = por %p85, %p86
      %s88 = ssub.s32 %s23, %s35
      %p89 = scmp.eq.s32.totalorder %s88, 0
      %s91 = sadd.s32 %s90, 1
      %s92 = scalar_select %p89, %s90, %s91
      %p95 = pneg %p89
      %p96 = scmp.eq.s32.totalorder %s16, 1
      %p97 = por %p95, %p96
      %p98 = scmp.ne.s32.totalorder %s90, %s93
      %p99 = scmp.eq.s32.totalorder %s16, 0
      %p100 = por %p98, %p99
      %p101 = scmp.ne.s32.totalorder %s90, %s93
      %p102 = scmp.eq.s32.totalorder %s21, 1
      %p103 = por %p101, %p102
      %p104 = scmp.ne.s32.totalorder %s93, %s94
      %p105 = scmp.eq.s32.totalorder %s21, 0
      %p106 = por %p104, %p105
      %p107 = scmp.ne.s32.totalorder %s93, %s94
      %p108 = scmp.eq.s32.totalorder %s22, 1
      %p109 = por %p107, %p108
      %p111 = scmp.ne.s32.totalorder %s94, %s110
      %p112 = scmp.eq.s32.totalorder %s22, 0
      %p113 = por %p111, %p112
      %s114 = ssub.s32 %s24, %s31
      %s115 = ssub.s32 %s23, %s35
      %s116 = sor.u32 %s114, %s115
      %p117 = scmp.eq.s32.totalorder %s116, 0
      %s119 = sadd.s32 %s118, 1
      %s120 = scalar_select %p117, %s118, %s119
      %p123 = pneg %p117
      %p124 = scmp.eq.s32.totalorder %s16, 1
      %p125 = por %p123, %p124
      %p126 = scmp.ne.s32.totalorder %s118, %s121
      %p127 = scmp.eq.s32.totalorder %s16, 0
      %p128 = por %p126, %p127
      %p129 = scmp.ne.s32.totalorder %s118, %s121
      %p130 = scmp.eq.s32.totalorder %s21, 1
      %p131 = por %p129, %p130
      %p132 = scmp.ne.s32.totalorder %s121, %s122
      %p133 = scmp.eq.s32.totalorder %s21, 0
      %p134 = por %p132, %p133
      %p135 = scmp.ne.s32.totalorder %s121, %s122
      %p136 = scmp.eq.s32.totalorder %s22, 1
      %p137 = por %p135, %p136
      %p139 = scmp.ne.s32.totalorder %s122, %s138
      %p140 = scmp.eq.s32.totalorder %s22, 0
      %p141 = por %p139, %p140
      %p142 = scmp.le.s32.totalorder 1, %s16
      %p143 = scmp.lt.s32.totalorder %s16, 3
      %p144 = pnand %p142, %p143
      %p145 = pneg %p144
      // Predicated region
      $region9: #{tpu_custom_call.1} parent=5 // pred_check
        _
      $region10: #{tpu_custom_call.1} parent=5 // pred_check_branch
        %147 = sbr.rel (%p144) target = $region12
      $region11: #{tpu_custom_call.1} parent=5 // pred_region
        %s148 = ssub.s32 %s16, 1
        // Predicated region
        $region13: #{tpu_custom_call.1} parent=11 // pred_check
          %p149 = pneg %p80
        $region14: #{tpu_custom_call.1} parent=11 // pred_check_branch
          %151 = sbr.rel (%p149) target = $region16
        $region15: #{tpu_custom_call.1} parent=11 // pred_region
          %s152 = smul.u32 2, %s25
          %s154 = ssub.s32 512, 512
          %155 = vsyncadd [#allocation6], %s154
          %s156 = smul.addr %s152, 128
          %s157 = scalar_lea.hbm %s1, %s156
          %s158 = sshll.u32 [#allocation5], 4
          %s159 = int_to_ptr.vmem [resolvable:$true] %s158
          %164 = dma.hbm_to_vmem [thread:$0]  %s157, 512, %s159, [#allocation6], 256, 256, 16
        $region16: #{tpu_custom_call.1} parent=11 // pred_fallthru
          _
        // Predicated region
        $region17: #{tpu_custom_call.1} parent=11 // pred_check
          %p165 = pneg %p106
        $region18: #{tpu_custom_call.1} parent=11 // pred_check_branch
          %167 = sbr.rel (%p165) target = $region20
        $region19: #{tpu_custom_call.1} parent=11 // pred_region
          %s168 = smul.u32 2, %s25
          %s170 = ssub.s32 32, 32
          %171 = vsyncadd [#allocation6], %s170
          %s172 = smul.addr %s168, 16
          %s173 = scalar_lea.hbm %s2, %s172
          %s175 = sshll.u32 [#allocation7], 4
          %s176 = int_to_ptr.vmem [resolvable:$true] %s175
          %178 = dma.hbm_to_vmem [thread:$0]  %s173, 32, %s176, [#allocation6]
        $region20: #{tpu_custom_call.1} parent=11 // pred_fallthru
          _
      $region12: #{tpu_custom_call.1} parent=5 // pred_fallthru
        _
      %p179 = scmp.lt.s32.totalorder %s16, 2
      // Predicated region
      $region21: #{tpu_custom_call.1} parent=5 // pred_check
        %p180 = pneg %p179
      $region22: #{tpu_custom_call.1} parent=5 // pred_check_branch
        %182 = sbr.rel (%p180) target = $region24
      $region23: #{tpu_custom_call.1} parent=5 // pred_region
        // Predicated region
        $region25: #{tpu_custom_call.1} parent=23 // pred_check
          %p183 = pneg %p48
        $region26: #{tpu_custom_call.1} parent=23 // pred_check_branch
          %185 = sbr.rel (%p183) target = $region28
        $region27: #{tpu_custom_call.1} parent=23 // pred_region
          %s186 = sand.u32 %s38, 1
          %s187 = scalar_lea.sflag [#allocation3], %s186
          %s188 = sand.u32 %s38, 1
          %s189 = smul.addr %s188, 8
          %s190 = scalar_lea.vmem [#allocation2], %s189
          %s192 = ssub.s32 128, 128
          %193 = vsyncadd %s187, %s192
          %s194 = smul.addr %s24, 128
          %s195 = scalar_lea.hbm %s0, %s194
          %s197 = sshll.u32 %s190, 4
          %s198 = int_to_ptr.vmem [resolvable:$true] %s197
          %200 = dma.hbm_to_vmem [thread:$0]  %s195, 128, %s198, %s187
        $region28: #{tpu_custom_call.1} parent=23 // pred_fallthru
          _
      $region24: #{tpu_custom_call.1} parent=5 // pred_fallthru
        _
      %p201 = scmp.le.s32.totalorder 1, %s16
      %p202 = scmp.lt.s32.totalorder %s16, 3
      %p203 = pnand %p201, %p202
      %p204 = pneg %p203
      // Predicated region
      $region29: #{tpu_custom_call.1} parent=5 // pred_check
        _
      $region30: #{tpu_custom_call.1} parent=5 // pred_check_branch
        %206 = sbr.rel (%p203) target = $region32
      $region31: #{tpu_custom_call.1} parent=5 // pred_region
        %s207 = ssub.s32 %s16, 1
        %s208 = sand.u32 %s41, 1
        %s209 = scalar_lea.sflag [#allocation3], %s208
        %s210 = sand.u32 %s41, 1
        %s211 = smul.addr %s210, 8
        %s212 = scalar_lea.vmem [#allocation2], %s211
        // Predicated region
        $region33: #{tpu_custom_call.1} parent=31 // pred_check
          %p213 = pneg %p54
        $region34: #{tpu_custom_call.1} parent=31 // pred_check_branch
          %215 = sbr.rel (%p213) target = $region36
        $region35: #{tpu_custom_call.1} parent=31 // pred_region
          %216 = dma.done %s209, 128
        $region36: #{tpu_custom_call.1} parent=31 // pred_fallthru
          _
        // Predicated region
        $region37: #{tpu_custom_call.1} parent=31 // pred_check
          %p217 = pneg %p80
        $region38: #{tpu_custom_call.1} parent=31 // pred_check_branch
          %219 = sbr.rel (%p217) target = $region40
        $region39: #{tpu_custom_call.1} parent=31 // pred_region
          %220 = dma.done [#allocation6], 512
        $region40: #{tpu_custom_call.1} parent=31 // pred_fallthru
          _
        // Predicated region
        $region41: #{tpu_custom_call.1} parent=31 // pred_check
          %p221 = pneg %p106
        $region42: #{tpu_custom_call.1} parent=31 // pred_check_branch
          %223 = sbr.rel (%p221) target = $region44
        $region43: #{tpu_custom_call.1} parent=31 // pred_region
          %224 = dma.done [#allocation6], 32
        $region44: #{tpu_custom_call.1} parent=31 // pred_fallthru
          _
        %s225 = sand.u32 %s41, 1
        %s226 = scalar_lea.sflag [#allocation3], %s225
        %s227 = sand.u32 %s41, 1
        %s228 = smul.addr %s227, 8
        %s229 = scalar_lea.vmem [#allocation2], %s228
        %p230 = pneg %p54
        %p231 = pneg %p51
        %p232 = pneg %p80
        %p233 = pneg %p77
        %p234 = pneg %p106
        %p235 = pneg %p103
        %p236 = pneg %p134
        %p237 = pneg %p131
        %s238 = sand.u32 %s121, 1
        %s239 = scalar_lea.sflag [#allocation4], %s238
        %s240 = sand.u32 %s121, 1
        %s241 = smul.addr %s240, 8
        %s242 = scalar_lea.vmem [#allocation8], %s241
        %s243 = smul.u32 2, %s25
        %s244 = smul.u32 2, %s25
        %v245 = vld [vmem:[%s212] sm:$0xff]
        %v246 = vld [vmem:[#allocation5] sm:$0xff]
        %v247 = vld [vmem:[#allocation5 + $0x8] sm:$0xff]
        %v248 = vld [vmem:[#allocation5 + $0x10] sm:$0xff]
        %v249 = vld [vmem:[#allocation5 + $0x18] sm:$0xff]
        %v250 = vld [vmem:[#allocation7] sm:$0x3]
        %v252 = vlaneseq
        %v253 = vshrl.u32 %v252, 7
        %v254 = vsub.s32 0, %v253
        %v255 = vrot.slane %v250, %v254
        %v256 = vlaneseq
        %v257 = vshrl.u32 %v256, 7
        %v258 = vsub.s32 1, %v257
        %v259 = vrot.slane %v250, %v258
        %vm262 = vcmask 130048
        %v264 = vsel %vm262, %v245, 0
        %266 = vmatprep.subr.mxu0 %v247
        %267 = vmatpush1.msra.mxu0 %v246
        %268 = vmatprep.subr.mxu0 %v249
        %269 = vmatpush1.msra.mxu0 %v248
        %270 = vmatprep.subr.mxu0 0.0
        %271 = vmatpush1.msra.mxu0 0.0
        %272 = vmatprep.subr.mxu0 0.0
        %273 = vmatpush1.msra.mxu0 0.0
        %274 = vmatprep.subr.mxu0 0.0
        %275 = vmatpush1.msra.mxu0 0.0
        %276 = vmatprep.subr.mxu0 0.0
        %277 = vmatpush1.msra.mxu0 0.0
        %278 = vmatprep.subr.mxu0 0.0
        %279 = vmatpush1.msra.mxu0 0.0
        %280 = vmatprep.subr.mxu0 0.0
        %281 = vmatpush1.msra.mxu0 0.0
        %282 = vmatprep.subr.mxu0 0.0
        %283 = vmatpush1.msra.mxu0 0.0
        %284 = vmatprep.subr.mxu0 0.0
        %285 = vmatpush1.msra.mxu0 0.0
        %286 = vmatprep.subr.mxu0 0.0
        %287 = vmatpush1.msra.mxu0 0.0
        %288 = vmatprep.subr.mxu0 0.0
        %289 = vmatpush1.msra.mxu0 0.0
        %290 = vmatprep.subr.mxu0 0.0
        %291 = vmatpush1.msra.mxu0 0.0
        %292 = vmatprep.subr.mxu0 0.0
        %293 = vmatpush1.msra.mxu0 0.0
        %294 = vmatprep.subr.mxu0 0.0
        %295 = vmatpush1.msra.mxu0 0.0
        %296 = vmatprep.subr.mxu0 0.0
        %297 = vmatpush1.msra.mxu0 0.0
        %298 = vmatprep.subr.mxu0 0.0
        %299 = vmatpush1.msra.mxu0 0.0
        %300 = vmatprep.subr.mxu0 0.0
        %301 = vmatpush1.msra.mxu0 0.0
        %302 = vmatprep.subr.mxu0 0.0
        %303 = vmatpush1.msra.mxu0 0.0
        %304 = vmatprep.subr.mxu0 0.0
        %305 = vmatpush1.msra.mxu0 0.0
        %306 = vmatprep.subr.mxu0 0.0
        %307 = vmatpush1.msra.mxu0 0.0
        %308 = vmatprep.subr.mxu0 0.0
        %309 = vmatpush1.msra.mxu0 0.0
        %310 = vmatprep.subr.mxu0 0.0
        %311 = vmatpush1.msra.mxu0 0.0
        %312 = vmatprep.subr.mxu0 0.0
        %313 = vmatpush1.msra.mxu0 0.0
        %314 = vmatprep.subr.mxu0 0.0
        %315 = vmatpush1.msra.mxu0 0.0
        %316 = vmatprep.subr.mxu0 0.0
        %317 = vmatpush1.msra.mxu0 0.0
        %318 = vmatprep.subr.mxu0 0.0
        %319 = vmatpush1.msra.mxu0 0.0
        %320 = vmatprep.subr.mxu0 0.0
        %321 = vmatpush1.msra.mxu0 0.0
        %322 = vmatprep.subr.mxu0 0.0
        %323 = vmatpush1.msra.mxu0 0.0
        %324 = vmatprep.subr.mxu0 0.0
        %325 = vmatpush1.msra.mxu0 0.0
        %326 = vmatprep.subr.mxu0 0.0
        %327 = vmatpush1.msra.mxu0 0.0
        %328 = vmatprep.subr.mxu0 0.0
        %329 = vmatpush1.msra.mxu0 0.0
        %330 = vmatprep.mubr.f32.mxu0 0.0
        %331 = vmatmul.mubr.f32.gmra.mrb[0].mxu0 %v264
        %v332 = vpop.f32.mrb[0].mxu0
        %v333 = vadd.f32 %v255, %v332
        %v334 = vpop.f32.mrb[0].mxu0
        %v335 = vadd.f32 %v259, %v334
        %336 = vdwg.mxu0
        %v337 = vxor.u32 %v333, 2147483648
        %v338 = vmul.f32 %v337, 1.442695
        %v339 = vpow.pop %v338
        %v340 = vadd.f32 %v339, 1.0
        %v341 = vrcp.pop %v340
        %v342 = vmul.f32 1.0, %v341
        %v343 = vmul.f32 %v342, %v335
        %344 = vst [vmem:[%s242] sm:$0xff] %v343
        %s345 = sand.u32 %s121, 1
        %s346 = scalar_lea.sflag [#allocation4], %s345
        %s347 = sand.u32 %s121, 1
        %s348 = smul.addr %s347, 8
        %s349 = scalar_lea.vmem [#allocation8], %s348
        // Predicated region
        $region45: #{tpu_custom_call.1} parent=31 // pred_check
          %p350 = pneg %p131
        $region46: #{tpu_custom_call.1} parent=31 // pred_check_branch
          %352 = sbr.rel (%p350) target = $region48
        $region47: #{tpu_custom_call.1} parent=31 // pred_region
          %s354 = ssub.s32 128, 128
          %355 = vsyncadd %s346, %s354
          %s356 = sadd.s32 %s25, %s26
          %s357 = smul.addr %s356, 128
          %s358 = scalar_lea.hbm %s3, %s357
          %s360 = sshll.u32 %s349, 4
          %s361 = int_to_ptr.vmem [resolvable:$true] %s360
          %363 = dma.vmem_to_hbm [thread:$0]  %s361, 128, %s358, %s346
        $region48: #{tpu_custom_call.1} parent=31 // pred_fallthru
          _
      $region32: #{tpu_custom_call.1} parent=5 // pred_fallthru
        _
      %p364 = scmp.le.s32.totalorder 2, %s16
      // Predicated region
      $region49: #{tpu_custom_call.1} parent=5 // pred_check
        %p365 = pneg %p364
      $region50: #{tpu_custom_call.1} parent=5 // pred_check_branch
        %367 = sbr.rel (%p365) target = $region52
      $region51: #{tpu_custom_call.1} parent=5 // pred_region
        %s368 = ssub.s32 %s16, 2
        // Predicated region
        $region53: #{tpu_custom_call.1} parent=51 // pred_check
          %p369 = pneg %p137
        $region54: #{tpu_custom_call.1} parent=51 // pred_check_branch
          %371 = sbr.rel (%p369) target = $region56
        $region55: #{tpu_custom_call.1} parent=51 // pred_region
          %s372 = sand.u32 %s122, 1
          %s373 = scalar_lea.sflag [#allocation4], %s372
          %s374 = sand.u32 %s122, 1
          %s375 = smul.addr %s374, 8
          %s376 = scalar_lea.vmem [#allocation8], %s375
          %377 = dma.done %s373, 128
        $region56: #{tpu_custom_call.1} parent=51 // pred_fallthru
          _
      $region52: #{tpu_custom_call.1} parent=5 // pred_fallthru
        _
    $region6: #{tpu_custom_call.1} parent=1 // loop_footer
      %s20 = sadd.s32 1, %s16
    $region7: #{tpu_custom_call.1} parent=1 // loop_footer_branch
      %15 = sbr.rel target = $region3
    $region8: #{tpu_custom_call.1} parent=1 // loop_exit
      _
    %378 = vsyncpa [#allocation3], 1
    %s379 = scalar_lea.sflag [#allocation3], 1
    %380 = vsyncpa %s379, 1
    %381 = vsyncpa [#allocation6], 1
    %382 = vsyncpa [#allocation4], 1
    %s383 = scalar_lea.sflag [#allocation4], 1
    %384 = vsyncpa %s383, 1

</llo_original>
